<compile_context>
chip_gen: v7x
topology: tpu7x:2x2x1
jax: 0.10.0
libtpu: 0.0.40
codegen_flags: <defaults>
</compile_context>

<pallas_src>
import functools
import math

import jax
import jax.numpy as jnp
from jax import lax
from jax.experimental import pallas as pl
from jax.experimental.pallas import tpu as pltpu


# -----------------------------------------------------------------------------
# Parameter setup (mirrors PositionalEncoding.__init__)
# -----------------------------------------------------------------------------
def make_positional_table(d_model: int, max_len: int = 5000) -> jnp.ndarray:
    position = jnp.arange(0, max_len, dtype=jnp.float32)[:, None]          # (L, 1)
    div_term = jnp.exp(
        jnp.arange(0, d_model, 2, dtype=jnp.float32)
        * (-math.log(10000.0) / d_model)
    )                                                                      # (D/2,)
    pe = jnp.zeros((max_len, d_model), dtype=jnp.float32)
    pe = pe.at[:, 0::2].set(jnp.sin(position * div_term))
    pe = pe.at[:, 1::2].set(jnp.cos(position * div_term))
    # .unsqueeze(0).transpose(0, 1)  ->  (max_len, 1, d_model)
    return pe[:, None, :]


# -----------------------------------------------------------------------------
# Tiling plan
# -----------------------------------------------------------------------------
def _round_up(n: int, m: int) -> int:
    return -(-n // m) * m


def _cdiv(a: int, b: int) -> int:
    return -(-a // b)


def _vmem_capacity_bytes() -> int:
    """Best-effort VMEM capacity query; safe fallback off-TPU / old jax."""
    try:
        info_fn = getattr(pltpu, "get_tpu_info", None)
        if info_fn is not None:
            cap = getattr(info_fn(), "vmem_capacity_bytes", None)
            if isinstance(cap, int) and cap > 0:
                return cap
    except Exception:
        pass
    return 128 << 20          # v5e / v6e per-TensorCore VMEM


def _plan_tiling(S, B, D, x_itemsize, pe_itemsize, user_block_s, user_block_c):
    """Pick (block_s, block_c) for the flattened (S, B*D) layout + a VMEM limit."""
    C = B * D
    cap = _vmem_capacity_bytes()
    if cap <= (64 << 20):
        # v7x-class: 3.2 TB/s HBM -> bigger tiles to amortize the ~0.35us/step
        # grid overhead, but only 64 MiB physical VMEM per TensorCore.
        target_bytes, max_limit = 10 << 20, cap - (6 << 20)
    else:
        # v5e/v6e: 4 MiB x-tiles are already at >=85% of the HBM roofline.
        target_bytes, max_limit = 4 << 20, 100 << 20
    budget = max_limit - (4 << 20)

    def lane_bytes(cols, item):
        return _round_up(max(int(cols), 1), 128) * item

    def working(bs, bc, pc):
        # Double-buffered working set: x in + y out (x dtype) + pe in (compute dtype).
        return 2 * bs * (2 * lane_bytes(bc, x_itemsize) + lane_bytes(pc, pe_itemsize))

    min_rows = 8 if S >= 8 else S

    # ---- lane (B*D) blocking -------------------------------------------------
    if user_block_c is not None:
        block_c = int(user_block_c)
        ok = (block_c == C) or (block_c % 128 == 0)
        ok = ok and ((block_c % D == 0 and C % block_c == 0) or (D % block_c == 0))
        if not ok:
            raise ValueError(
                "block_c must be a multiple of d_model dividing B*D, or a divisor "
                "of d_model, and be a multiple of 128 (or equal B*D)")
    else:
        block_c = C
        if working(min_rows, C, min(C, D)) > budget:
            # Wide B*D rows: split the lane axis. v7x's smaller VMEM hits this
            # before v5e/v6e.  Prefer whole-batch groups (pe tile stays full D).
            block_c = None
            for g in range(B, 0, -1):
                bc = g * D
                if B % g == 0 and bc % 128 == 0 and working(min_rows, bc, D) <= budget:
                    block_c = bc
                    break
            if block_c is None:
                for k in range(D // 128, 0, -1):          # split inside D
                    bc = k * 128
                    if D % bc == 0 and working(min_rows, bc, bc) <= budget:
                        block_c = bc
                        break
            if block_c is None:
                # TODO(synk): D not 128-divisible and a single row overflows the
                # VMEM budget -- fall back to full rows with minimal block_s.
                block_c = C

    pe_cols = min(block_c, D)          # pe tile width (full D, or a 128-multiple divisor)
    reps = block_c // pe_cols          # batch repeats of the pe tile inside the kernel
    n_pe = D // pe_cols                # number of pe lane blocks (for the index_map modulo)

    # ---- seq blocking (multiples of 8 sublanes, sized by bytes) ---------------
    if user_block_s is not None:
        block_s = max(1, min(int(user_block_s), S))
        if S >= 8:
            block_s = max(8, (block_s // 8) * 8)
    else:
        per_row_x = lane_bytes(block_c, x_itemsize)
        block_s = max(min_rows, target_bytes // max(per_row_x, 1))
        per_row_work = 2 * (2 * lane_bytes(block_c, x_itemsize)
                            + lane_bytes(pe_cols, pe_itemsize))
        block_s = min(block_s, max(min_rows, budget // max(per_row_work, 1)))
        block_s = min(block_s, S)
        if S >= 8:
            block_s = max(8, (block_s // 8) * 8)

    vmem_limit = int(min(max(32 << 20, working(block_s, block_c, pe_cols) + (8 << 20)),
                         max_limit))
    return block_s, block_c, pe_cols, reps, n_pe, vmem_limit


# -----------------------------------------------------------------------------
# Pallas kernel: y = dropout(x + pe[row_block]) on a (block_s, block_c) tile
# -----------------------------------------------------------------------------
def _pe_kernel(seed_ref, x_ref, pe_ref, o_ref, *, reps: int, train: bool,
               drop_threshold: int, keep_scale: float, block_s: int,
               block_c: int, total_cols: int, compute_dtype):
    pe = pe_ref[...]                                   # (block_s, pe_cols), compute dtype
    if reps > 1:
        pe = jnp.tile(pe, (1, reps))                   # repeat over batch along lanes (XLU)
    y = x_ref[...].astype(compute_dtype) + pe

    if train and drop_threshold > 0:
        # Inverted dropout from a counter-based hash (splitmix32-style finalizer)
        # of the absolute element index.  Pure integer VPU ops -> lowers on both
        # Mosaic and the CPU interpreter; keep/drop is a raw-bits threshold
        # compare (no u32->f32 convert / scale on the hot path).
        r0 = pl.program_id(0) * block_s
        c0 = pl.program_id(1) * block_c
        rows = lax.broadcasted_iota(jnp.int32, y.shape, 0) + r0
        cols = lax.broadcasted_iota(jnp.int32, y.shape, 1) + c0
        h = (rows * total_cols + cols).astype(jnp.uint32)
        h = h + seed_ref[0].astype(jnp.uint32) * jnp.uint32(0x9E3779B9)
        h = h ^ (h >> 16)
        h = h * jnp.uint32(0x7FEB352D)
        h = h ^ (h >> 15)
        h = h * jnp.uint32(0x846CA68B)
        h = h ^ (h >> 16)
        keep = h >= jnp.uint32(drop_threshold)         # P(drop) = drop_threshold / 2^32 ~= p
        scale = jnp.asarray(keep_scale, dtype=y.dtype)
        y = jnp.where(keep, y * scale, jnp.zeros((), dtype=y.dtype))
    # TODO(synk): dropout mask cannot bit-match torch's RNG stream; eval mode
    # (train=False) is bit-exact with the PyTorch module in .eval().

    o_ref[...] = y.astype(o_ref.dtype)


# -----------------------------------------------------------------------------
# Wrapper
# -----------------------------------------------------------------------------
def positional_encoding(x, pe, *, p: float = 0.1, train: bool = False, seed: int = 0,
                        block_s=None, block_c=None, compute_dtype=None,
                        donate_x: bool = False):
    """x: (S, B, D);  pe: (max_len, 1, D) or (max_len, D).  Returns dropout(x + pe[:S])."""
    S, B, D = x.shape
    assert 0.0 <= p <= 1.0, "dropout probability must be in [0, 1]"
    pe = jnp.asarray(pe)
    pe2d = pe.reshape(pe.shape[0], pe.shape[-1])       # (max_len, D) -- free squeeze
    max_len = pe2d.shape[0]
    assert pe2d.shape[1] == D and max_len >= S, "pe table too short / wrong d_model"

    if compute_dtype is None:
        # bf16-native add on v6e/v7x for bf16 inputs; f32 otherwise.
        # TODO(synk): on v5e (no bf16 VALU) pass compute_dtype=jnp.float32 explicitly.
        compute_dtype = jnp.bfloat16 if x.dtype == jnp.bfloat16 else jnp.float32
    compute_dtype = jnp.dtype(compute_dtype)

    C = B * D
    block_s, block_c, pe_cols, reps, n_pe, vmem_limit = _plan_tiling(
        S, B, D, jnp.dtype(x.dtype).itemsize, compute_dtype.itemsize, block_s, block_c)

    # pe table: pass the whole table (no wrapper-side pe[:S] copy = no extra HBM
    # pass).  Fall back to a small slice(+pad) copy only when the grid's padded
    # last block would index past max_len, or block_s can't be 8-aligned (tiny S).
    if pe2d.dtype != compute_dtype:
        pe2d = pe2d.astype(compute_dtype)   # one-time cast; store the table in compute dtype to avoid
    needed_rows = _cdiv(S, block_s) * block_s
    if block_s % 8 == 0 and max_len >= needed_rows:
        pe_arr = pe2d
    else:
        pe_arr = pe2d[:min(S, max_len)]
        if needed_rows > pe_arr.shape[0]:
            pe_arr = jnp.pad(pe_arr, ((0, needed_rows - pe_arr.shape[0]), (0, 0)))

    x2 = x.reshape(S, C)                    # lane-dense layout: (B, D) collapsed onto lanes
    seed_arr = jnp.asarray([seed], dtype=jnp.int32)

    # p=1.0: threshold keeps ~2^-32 of elements, keep_scale=0 zeroes them anyway.
    drop_threshold = min(int(round(p * float(2 ** 32))), 2 ** 32 - 1)
    keep_scale = 1.0 / (1.0 - p) if p < 1.0 else 0.0

    kernel = functools.partial(
        _pe_kernel, reps=reps, train=bool(train), drop_threshold=drop_threshold,
        keep_scale=keep_scale, block_s=block_s, block_c=block_c, total_cols=C,
        compute_dtype=compute_dtype)

    grid = (_cdiv(S, block_s), _cdiv(C, block_c))
    if n_pe == 1:
        pe_index_map = lambda i, j: (i, 0)
    else:
        pe_index_map = lambda i, j: (i, j % n_pe)

    out = pl.pallas_call(
        kernel,
        out_shape=jax.ShapeDtypeStruct((S, C), x.dtype),
        grid_spec=pltpu.PrefetchScalarGridSpec(
            num_scalar_prefetch=0,
            grid=grid,
            in_specs=[
                pl.BlockSpec(memory_space=pltpu.SMEM),                   # seed (scalar)
                pl.BlockSpec((block_s, block_c), lambda i, j: (i, j)),   # x (flattened)
                pl.BlockSpec((block_s, pe_cols), pe_index_map),          # pe rows / D-chunk
            ],
            out_specs=pl.BlockSpec((block_s, block_c), lambda i, j: (i, j)),
        ),
        compiler_params=pltpu.CompilerParams(
            dimension_semantics=("parallel", "parallel"),   # independent tiles -> both v7x TCs
            vmem_limit_bytes=vmem_limit,
        ),
        input_output_aliases=({1: 0} if donate_x else {}),
    )(seed_arr, x2, pe_arr)
    return out.reshape(S, B, D)


# -----------------------------------------------------------------------------
# Demo / self-check
# -----------------------------------------------------------------------------
if __name__ == "__main__":
    SEQ, BATCH, D_MODEL, MAX_LEN = 8, 2, 32, 64

    key = jax.random.PRNGKey(0)
    x = jax.random.normal(key, (SEQ, BATCH, D_MODEL), dtype=jnp.float32)
    pe = make_positional_table(D_MODEL, MAX_LEN)
    expected = x + pe[:SEQ]

    # Eval mode (dropout = identity): bit-exact with the PyTorch module.eval().
    out = positional_encoding(x, pe, p=0.1, train=False)
    out = jax.block_until_ready(out)
    assert out.shape == (SEQ, BATCH, D_MODEL)
    assert jnp.allclose(out, expected, atol=1e-6, rtol=1e-6)

    # Ragged seq path: cdiv grid, masked last block, full-table pe indexing.
    S2 = 20
    x2 = jax.random.normal(jax.random.PRNGKey(1), (S2, BATCH, D_MODEL), dtype=jnp.float32)
    out2 = jax.block_until_ready(positional_encoding(x2, pe, p=0.1, train=False, block_s=8))
    assert jnp.allclose(out2, x2 + pe[:S2], atol=1e-6, rtol=1e-6)

    # Lane-split path: block_c < B*D exercises the pe modulo index_map.
    D3 = 256
    pe3 = make_positional_table(D3, MAX_LEN)
    x3 = jax.random.normal(jax.random.PRNGKey(2), (SEQ, BATCH, D3), dtype=jnp.float32)
    out3 = jax.block_until_ready(positional_encoding(x3, pe3, p=0.1, train=False, block_c=128))
    assert jnp.allclose(out3, x3 + pe3[:SEQ], atol=1e-6, rtol=1e-6)

    # Training path: kept entries must equal (x + pe) / (1 - p), some kept and some dropped.
    p_drop = 0.25
    out_tr = jax.block_until_ready(positional_encoding(x, pe, p=p_drop, train=True, seed=123))
    kept = out_tr != 0.0
    scaled = expected / (1.0 - p_drop)
    ok = jnp.where(kept, jnp.abs(out_tr - scaled) <= 1e-4 + 1e-4 * jnp.abs(scaled), True)
    assert bool(jnp.all(ok))
    assert bool(jnp.any(kept)) and bool(jnp.any(~kept))

    print("KERNEL_OK")
</pallas_src>

<mosaic_0001>
module attributes {stable_mosaic.version = 11 : i64} {
  func.func @_pe_kernel(%arg0: i32, %arg1: i32, %arg2: memref<1xi32, #tpu.memory_space<smem>>, %arg3: memref<8x64xf32, #tpu.memory_space<vmem>>, %arg4: memref<8x32xf32, #tpu.memory_space<vmem>>, %arg5: memref<8x64xf32, #tpu.memory_space<vmem>>) attributes {dimension_semantics = [#tpu.dimension_semantics<parallel>, #tpu.dimension_semantics<parallel>], iteration_bounds = array<i64: 1, 1>, scalar_prefetch = 0 : i64, scratch_operands = 0 : i64, tpu.core_type = #tpu.core_type<tc>, window_params = [{transform_indices = @transform_0, window_bounds = array<i64: 1>}, {transform_indices = @transform_1, window_bounds = array<i64: 8, 64>}, {transform_indices = @transform_2, window_bounds = array<i64: 8, 32>}, {transform_indices = @transform_3, window_bounds = array<i64: 8, 64>}]} {
    %c0 = arith.constant 0 : index
    %c0_0 = arith.constant 0 : index
    %0 = vector.load %arg4[%c0, %c0_0] : memref<8x32xf32, #tpu.memory_space<vmem>>, vector<8x32xf32>
    %1 = tpu.concatenate %0, %0 in 1 : vector<8x32xf32>, vector<8x32xf32> -> vector<8x64xf32>
    %c0_1 = arith.constant 0 : index
    %c0_2 = arith.constant 0 : index
    %2 = vector.load %arg3[%c0_1, %c0_2] : memref<8x64xf32, #tpu.memory_space<vmem>>, vector<8x64xf32>
    %3 = arith.addf %2, %1 : vector<8x64xf32>
    %c0_3 = arith.constant 0 : index
    %c0_4 = arith.constant 0 : index
    %4 = vector.load %arg5[%c0_3, %c0_4] : memref<8x64xf32, #tpu.memory_space<vmem>>, vector<8x64xf32>
    tpu.vector_store %arg5[%c0_3, %c0_4], %3 {strides = array<i32>} : memref<8x64xf32, #tpu.memory_space<vmem>>, vector<8x64xf32>,
    return
  }
  func.func @transform_0(%arg0: i32, %arg1: i32) -> i32 {
    %c0_i32 = arith.constant 0 : i32
    %c0_i32_0 = arith.constant 0 : i32
    return %c0_i32 : i32
  }
  func.func @transform_1(%arg0: i32, %arg1: i32) -> (i32, i32) {
    %c0_i32 = arith.constant 0 : i32
    return %arg0, %arg1 : i32, i32
  }
  func.func @transform_2(%arg0: i32, %arg1: i32) -> (i32, i32) {
    %c0_i32 = arith.constant 0 : i32
    %c0_i32_0 = arith.constant 0 : i32
    return %arg0, %c0_i32 : i32, i32
  }
  func.func @transform_3(%arg0: i32, %arg1: i32) -> (i32, i32) {
    %c0_i32 = arith.constant 0 : i32
    return %arg0, %arg1 : i32, i32
  }
}

</mosaic_0001>

<llo_original>
// kernel: tpu_custom_call.1
$region0: #{tpu_custom_call.1}
  #allocation0 [shape = 'u32[]', space=smem, size = 0x4, offset = 0x4, fixed_abs, tag = 'smem constant byte address 0x4 - core index']
  #allocation1 [shape = 'u32[144,128]{1,0:T(1,128)}', space=vmem, size = 0x12000, scoped, tag = 'internal scratch']
  #allocation2 [shape = 's32[1]{0:T(128)S(6)}', space=smem, size = 0x200, scoped, tag = 'scoped memory for tpu_custom_call.1']
  %s0 = inlined_call_operand.<no memory space> [shape: s32[1], index: 0, kind: input, shape index: {}]
  %s1 = inlined_call_operand.vmem [shape: f32[8,64], index: 1, kind: input, shape index: {}]
  %s2 = inlined_call_operand.vmem [shape: f32[64,32], index: 2, kind: input, shape index: {}]
  %s3 = inlined_call_operand.hbm [shape: f32[8,64], index: 3, kind: output, shape index: {}]
  %s4 = sld [smem:[#allocation0]]
  $region22: #{tpu_custom_call.1} parent=0
    _
  %s6 = ssub.s32 1, %s4
  %s7 = scalar_select 0, %s6, %s4
  %8 = sst [smem:[#allocation2]] %s0
  $region1: #{tpu_custom_call.1} parent=0
    #allocation3 [shape = 'u8[4096]{0}', space=vmem, size = 0x1000, scoped, tag = 'output window, operand 0, single buffered']
    #allocation4 [shape = 's32[1]{0}', space=sflag, size = 0x4, scoped, tag = 'scoped memory for tpu_custom_call.1']
    %9 = vsyncpa [#allocation4], 0
    // Predicated region
    $region2: #{tpu_custom_call.1} parent=1 // pred_check
      _
    $region3: #{tpu_custom_call.1} parent=1 // pred_check_branch
      %11 = sbr.rel (0) target = $region5
    $region4: #{tpu_custom_call.1} parent=1 // pred_region
      _
    $region5: #{tpu_custom_call.1} parent=1 // pred_fallthru
      _
    // Predicated region
    $region6: #{tpu_custom_call.1} parent=1 // pred_check
      _
    $region7: #{tpu_custom_call.1} parent=1 // pred_check_branch
      %13 = sbr.rel (0) target = $region9
    $region8: #{tpu_custom_call.1} parent=1 // pred_region
      _
    $region9: #{tpu_custom_call.1} parent=1 // pred_fallthru
      _
    // Predicated region
    $region10: #{tpu_custom_call.1} parent=1 // pred_check
      _
    $region11: #{tpu_custom_call.1} parent=1 // pred_check_branch
      %15 = sbr.rel (0) target = $region13
    $region12: #{tpu_custom_call.1} parent=1 // pred_region
      _
    $region13: #{tpu_custom_call.1} parent=1 // pred_fallthru
      _
    %v16 = vld [vmem:[%s2] sm:$0xff]
    %18 = vrot.lane.b32.xlu0 %v16, 32
    %v19 = vpop.permute.xlu0 %18
    %vm21 = vcmask 261120
    %v22 = vsel %vm21, %v16, %v19
    %v23 = vld [vmem:[%s1] sm:$0xff]
    %v24 = vadd.f32 %v23, %v22
    %vm25 = vcmask 523264
    %26 = vst.msk [vmem:[#allocation3] sm:$0xff] %vm25, %v24
    // Predicated region
    $region14: #{tpu_custom_call.1} parent=1 // pred_check
      _
    $region15: #{tpu_custom_call.1} parent=1 // pred_check_branch
      %28 = sbr.rel (0) target = $region17
    $region16: #{tpu_custom_call.1} parent=1 // pred_region
      %s30 = ssub.s32 128, 128
      %31 = vsyncadd [#allocation4], %s30
      %s33 = sshll.u32 [#allocation3], 4
      %s34 = int_to_ptr.vmem [resolvable:$true] %s33
      %36 = dma.vmem_to_hbm [thread:$0]  %s34, 128, %s3, [#allocation4]
    $region17: #{tpu_custom_call.1} parent=1 // pred_fallthru
      _
    // Predicated region
    $region18: #{tpu_custom_call.1} parent=1 // pred_check
      _
    $region19: #{tpu_custom_call.1} parent=1 // pred_check_branch
      %38 = sbr.rel (0) target = $region21
    $region20: #{tpu_custom_call.1} parent=1 // pred_region
      %39 = dma.done [#allocation4], 128
    $region21: #{tpu_custom_call.1} parent=1 // pred_fallthru
      _
    %40 = vsyncpa [#allocation4], 1

</llo_original>
